<compile_context>
chip_gen: v5e
topology: v5e:2x2
jax: 0.10.0
libtpu: 0.0.40
codegen_flags: <defaults>
</compile_context>

<pallas_src>
import functools

import jax
import jax.numpy as jnp
from jax.experimental import pallas as pl
from jax.experimental.pallas import tpu as pltpu

_SUB = 16  # bf16 sublane granularity; batch axis is rounded to this


def _round_up(x, m):
  return (x + m - 1) // m * m


def _decoder_kernel(z_ref, w1_ref, b1_ref, w2_ref, b2_ref, w3_ref, b3_ref,
                    o_ref):
  """Fused Linear->ReLU->Linear->ReLU->Linear->Sigmoid on one batch tile.

  z_ref: (tb, nin) bf16; w*_ref: (in, out) bf16; b*_ref: (1, out) f32;
  o_ref: (tb, nout) bf16.
  """
  z = z_ref[...]
  h1 = jnp.dot(z, w1_ref[...], preferred_element_type=jnp.float32)
  h1 = jnp.maximum(h1 + b1_ref[...], 0.0)                       # ReLU (f32)
  h2 = jnp.dot(h1.astype(jnp.bfloat16), w2_ref[...],
               preferred_element_type=jnp.float32)
  h2 = jnp.maximum(h2 + b2_ref[...], 0.0)                       # ReLU (f32)
  h3 = jnp.dot(h2.astype(jnp.bfloat16), w3_ref[...],
               preferred_element_type=jnp.float32)
  h3 = h3 + b3_ref[...]
  # Sigmoid: exp and approx reciprocal both route to the EUP (free VLIW slot).
  e = jnp.exp(-h3)
  o_ref[...] = pl.reciprocal(1.0 + e, approx=True).astype(o_ref.dtype)


def prepare_decoder_params(params):
  """One-time prep: weights -> bf16 (MXU feed); biases stay f32, shape (1, n).

  Call once and reuse; keeps per-forward work down to the fused kernel only.
  """
  w1, b1, w2, b2, w3, b3 = params
  return (w1.astype(jnp.bfloat16), b1.reshape(1, -1).astype(jnp.float32),
          w2.astype(jnp.bfloat16), b2.reshape(1, -1).astype(jnp.float32),
          w3.astype(jnp.bfloat16), b3.reshape(1, -1).astype(jnp.float32))


@functools.partial(jax.jit, static_argnames=("tb",))
def decoder_forward(z, prepared_params, *, tb=1024):
  """z: (..., nin) latent; returns sigmoid(MLP(z)) as (B, nout) bf16."""
  w1, b1, w2, b2, w3, b3 = prepared_params
  nin, nh1 = w1.shape
  nh2, nout = w3.shape

  # Single cast to bf16 (no f32 detour, no feature-dim padding / extra pass).
  z2d = z.reshape(-1, nin).astype(jnp.bfloat16)
  b = z2d.shape[0]

  # Batch rounding at sublane granularity (16 rows for bf16), not lane (128).
  b_pad = _round_up(b, _SUB)
  tb_eff = min(_round_up(tb, _SUB), b_pad)
  b_pad = _round_up(b, tb_eff)
  # v7x has 2 TensorCores: ensure >=2 grid steps when the batch allows it.
  if b_pad // tb_eff == 1 and tb_eff % (2 * _SUB) == 0:
    tb_eff //= 2
  grid = (b_pad // tb_eff,)

  zp = jnp.pad(z2d, ((0, b_pad - b), (0, 0))) if b_pad != b else z2d

  def _full(shape):
    # Constant block index -> weights/biases stay resident in VMEM.
    return pl.BlockSpec(shape, lambda i: (0,) * len(shape))

  wdots = nin * nh1 + nh1 * nh2 + nh2 * nout
  cost = pl.CostEstimate(
      flops=2 * b_pad * wdots,
      transcendentals=b_pad * nout,                   # exp in sigmoid
      bytes_accessed=(b_pad * nin * 2 +               # z (bf16)
                      b_pad * nout * 2 +              # out (bf16)
                      wdots * 2 +                     # weights (bf16)
                      (nh1 + nh2 + nout) * 4))        # biases (f32)

  out = pl.pallas_call(
      _decoder_kernel,
      out_shape=jax.ShapeDtypeStruct((b_pad, nout), jnp.bfloat16),
      grid_spec=pltpu.PrefetchScalarGridSpec(
          num_scalar_prefetch=0,
          grid=grid,
          in_specs=[
              pl.BlockSpec((tb_eff, nin), lambda i: (i, 0)),  # z batch tile
              _full(w1.shape), _full(b1.shape),
              _full(w2.shape), _full(b2.shape),
              _full(w3.shape), _full(b3.shape),
          ],
          out_specs=pl.BlockSpec((tb_eff, nout), lambda i: (i, 0)),
      ),
      compiler_params=pltpu.CompilerParams(
          dimension_semantics=("parallel",)),
      cost_estimate=cost,
  )(zp, w1, b1, w2, b2, w3, b3)

  if b_pad != b:
    out = out[:b]          # row-only slice; no column-compaction pass
  return out


def init_decoder_params(key, nin, nout, nh1, nh2):
  """Deterministic init mimicking nn.Linear default (U(-1/sqrt(fan_in), +))."""
  def linear(k, fan_in, fan_out):
    kw, kb = jax.random.split(k)
    bound = 1.0 / jnp.sqrt(jnp.float32(fan_in))
    # stored as (in, out) so the kernel does x @ W
    w = jax.random.uniform(kw, (fan_in, fan_out), jnp.float32, -bound, bound)
    bv = jax.random.uniform(kb, (1, fan_out), jnp.float32, -bound, bound)
    return w, bv

  k1, k2, k3 = jax.random.split(key, 3)
  w1, b1 = linear(k1, nin, nh1)
  w2, b2 = linear(k2, nh1, nh2)
  w3, b3 = linear(k3, nh2, nout)
  return (w1, b1, w2, b2, w3, b3)


if __name__ == "__main__":
  # Decoder maps a low-dim latent back to data space (nout = 28*28).
  nz, nout, nh1, nh2 = 32, 28 * 28, 64, 128
  batch = 8

  key = jax.random.PRNGKey(0)
  k_params, k_z = jax.random.split(key)
  params = init_decoder_params(k_params, nz, nout, nh1, nh2)
  prepared = prepare_decoder_params(params)   # one-time weight prep (bf16)
  z = jax.random.normal(k_z, (batch, nz), jnp.float32)

  out = decoder_forward(z, prepared)
  out = jax.block_until_ready(out)

  # Pure-JAX f32 reference (kernel uses bf16 matmuls + bf16 output, hence the
  # looser tolerance; sigmoid outputs live in [0, 1] so atol dominates).
  w1, b1, w2, b2, w3, b3 = params
  ref = jnp.maximum(z @ w1 + b1, 0.0)
  ref = jnp.maximum(ref @ w2 + b2, 0.0)
  ref = jax.nn.sigmoid(ref @ w3 + b3)

  assert out.shape == (batch, nout)
  assert out.dtype == jnp.bfloat16
  out_f32 = out.astype(jnp.float32)
  assert bool(jnp.all(jnp.isfinite(out_f32)))
  assert jnp.allclose(out_f32, ref, atol=2e-2, rtol=2e-2)

  print("KERNEL_OK")
</pallas_src>

<mosaic_0001>
module attributes {stable_mosaic.version = 11 : i64} {
  func.func @_decoder_kernel(%arg0: i32, %arg1: memref<16x32xbf16, #tpu.memory_space<vmem>>, %arg2: memref<32x64xbf16, #tpu.memory_space<vmem>>, %arg3: memref<1x64xf32, #tpu.memory_space<vmem>>, %arg4: memref<64x128xbf16, #tpu.memory_space<vmem>>, %arg5: memref<1x128xf32, #tpu.memory_space<vmem>>, %arg6: memref<128x784xbf16, #tpu.memory_space<vmem>>, %arg7: memref<1x784xf32, #tpu.memory_space<vmem>>, %arg8: memref<16x784xbf16, #tpu.memory_space<vmem>>) attributes {dimension_semantics = [#tpu.dimension_semantics<parallel>], iteration_bounds = array<i64: 1>, scalar_prefetch = 0 : i64, scratch_operands = 0 : i64, tpu.core_type = #tpu.core_type<tc>, window_params = [{transform_indices = @transform_0, window_bounds = array<i64: 16, 32>}, {pipeline_mode = #tpu.pipeline_mode<synchronous>, transform_indices = @transform_1, window_bounds = array<i64: 32, 64>}, {pipeline_mode = #tpu.pipeline_mode<synchronous>, transform_indices = @transform_2, window_bounds = array<i64: 1, 64>}, {pipeline_mode = #tpu.pipeline_mode<synchronous>, transform_indices = @transform_3, window_bounds = array<i64: 64, 128>}, {pipeline_mode = #tpu.pipeline_mode<synchronous>, transform_indices = @transform_4, window_bounds = array<i64: 1, 128>}, {pipeline_mode = #tpu.pipeline_mode<synchronous>, transform_indices = @transform_5, window_bounds = array<i64: 128, 784>}, {pipeline_mode = #tpu.pipeline_mode<synchronous>, transform_indices = @transform_6, window_bounds = array<i64: 1, 784>}, {transform_indices = @transform_7, window_bounds = array<i64: 16, 784>}]} {
    %c0 = arith.constant 0 : index
    %c0_0 = arith.constant 0 : index
    %0 = vector.load %arg1[%c0, %c0_0] : memref<16x32xbf16, #tpu.memory_space<vmem>>, vector<16x32xbf16>
    %c0_1 = arith.constant 0 : index
    %c0_2 = arith.constant 0 : index
    %1 = vector.load %arg2[%c0_1, %c0_2] : memref<32x64xbf16, #tpu.memory_space<vmem>>, vector<32x64xbf16>
    %cst = arith.constant dense<0.000000e+00> : vector<16x64xf32>
    %2 = tpu.matmul %0, %1, %cst {dimension_numbers = #tpu.dot_dimension_numbers<[1], [0], [0], [1], [0, 0, 1, 1], [], []>} : vector<16x32xbf16>, vector<32x64xbf16>, vector<16x64xf32> -> vector<16x64xf32>
    %c0_3 = arith.constant 0 : index
    %c0_4 = arith.constant 0 : index
    %3 = vector.load %arg3[%c0_3, %c0_4] : memref<1x64xf32, #tpu.memory_space<vmem>>, vector<1x64xf32>
    %4 = vector.broadcast %3 : vector<1x64xf32> to vector<16x64xf32>
    %5 = arith.addf %2, %4 : vector<16x64xf32>
    %cst_5 = arith.constant 0.000000e+00 : f32
    %6 = vector.broadcast %cst_5 : f32 to vector<16x64xf32>
    %7 = arith.maximumf %5, %6 : vector<16x64xf32>
    %8 = arith.truncf %7 : vector<16x64xf32> to vector<16x64xbf16>
    %c0_6 = arith.constant 0 : index
    %c0_7 = arith.constant 0 : index
    %9 = vector.load %arg4[%c0_6, %c0_7] : memref<64x128xbf16, #tpu.memory_space<vmem>>, vector<64x128xbf16>
    %cst_8 = arith.constant dense<0.000000e+00> : vector<16x128xf32>
    %10 = tpu.matmul %8, %9, %cst_8 {dimension_numbers = #tpu.dot_dimension_numbers<[1], [0], [0], [1], [0, 0, 1, 1], [], []>} : vector<16x64xbf16>, vector<64x128xbf16>, vector<16x128xf32> -> vector<16x128xf32>
    %c0_9 = arith.constant 0 : index
    %c0_10 = arith.constant 0 : index
    %11 = vector.load %arg5[%c0_9, %c0_10] : memref<1x128xf32, #tpu.memory_space<vmem>>, vector<1x128xf32>
    %12 = vector.broadcast %11 : vector<1x128xf32> to vector<16x128xf32>
    %13 = arith.addf %10, %12 : vector<16x128xf32>
    %cst_11 = arith.constant 0.000000e+00 : f32
    %14 = vector.broadcast %cst_11 : f32 to vector<16x128xf32>
    %15 = arith.maximumf %13, %14 : vector<16x128xf32>
    %16 = arith.truncf %15 : vector<16x128xf32> to vector<16x128xbf16>
    %c0_12 = arith.constant 0 : index
    %c0_13 = arith.constant 0 : index
    %17 = vector.load %arg6[%c0_12, %c0_13] : memref<128x784xbf16, #tpu.memory_space<vmem>>, vector<128x784xbf16>
    %cst_14 = arith.constant dense<0.000000e+00> : vector<16x784xf32>
    %18 = tpu.matmul %16, %17, %cst_14 {dimension_numbers = #tpu.dot_dimension_numbers<[1], [0], [0], [1], [0, 0, 1, 1], [], []>} : vector<16x128xbf16>, vector<128x784xbf16>, vector<16x784xf32> -> vector<16x784xf32>
    %c0_15 = arith.constant 0 : index
    %c0_16 = arith.constant 0 : index
    %19 = vector.load %arg7[%c0_15, %c0_16] : memref<1x784xf32, #tpu.memory_space<vmem>>, vector<1x784xf32>
    %20 = vector.broadcast %19 : vector<1x784xf32> to vector<16x784xf32>
    %21 = arith.addf %18, %20 : vector<16x784xf32>
    %cst_17 = arith.constant 0.000000e+00 : f32
    %22 = vector.broadcast %cst_17 : f32 to vector<16x784xf32>
    %23 = arith.subf %22, %21 : vector<16x784xf32>
    %24 = math.exp %23 : vector<16x784xf32>
    %cst_18 = arith.constant 1.000000e+00 : f32
    %25 = vector.broadcast %cst_18 : f32 to vector<16x784xf32>
    %26 = arith.addf %25, %24 : vector<16x784xf32>
    %27 = tpu.reciprocal %26 {approx = true} : vector<16x784xf32> -> vector<16x784xf32>
    %28 = arith.truncf %27 : vector<16x784xf32> to vector<16x784xbf16>
    %c0_19 = arith.constant 0 : index
    %c0_20 = arith.constant 0 : index
    %29 = vector.load %arg8[%c0_19, %c0_20] : memref<16x784xbf16, #tpu.memory_space<vmem>>, vector<16x784xbf16>
    tpu.vector_store %arg8[%c0_19, %c0_20], %28 {strides = array<i32>} : memref<16x784xbf16, #tpu.memory_space<vmem>>, vector<16x784xbf16>,
    return
  }
  func.func @transform_0(%arg0: i32) -> (i32, i32) {
    %c0_i32 = arith.constant 0 : i32
    %c0_i32_0 = arith.constant 0 : i32
    return %arg0, %c0_i32 : i32, i32
  }
  func.func @transform_1(%arg0: i32) -> (i32, i32) {
    %c0_i32 = arith.constant 0 : i32
    %c0_i32_0 = arith.constant 0 : i32
    %c0_i32_1 = arith.constant 0 : i32
    return %c0_i32, %c0_i32_0 : i32, i32
  }
  func.func @transform_2(%arg0: i32) -> (i32, i32) {
    %c0_i32 = arith.constant 0 : i32
    %c0_i32_0 = arith.constant 0 : i32
    %c0_i32_1 = arith.constant 0 : i32
    return %c0_i32, %c0_i32_0 : i32, i32
  }
  func.func @transform_3(%arg0: i32) -> (i32, i32) {
    %c0_i32 = arith.constant 0 : i32
    %c0_i32_0 = arith.constant 0 : i32
    %c0_i32_1 = arith.constant 0 : i32
    return %c0_i32, %c0_i32_0 : i32, i32
  }
  func.func @transform_4(%arg0: i32) -> (i32, i32) {
    %c0_i32 = arith.constant 0 : i32
    %c0_i32_0 = arith.constant 0 : i32
    %c0_i32_1 = arith.constant 0 : i32
    return %c0_i32, %c0_i32_0 : i32, i32
  }
  func.func @transform_5(%arg0: i32) -> (i32, i32) {
    %c0_i32 = arith.constant 0 : i32
    %c0_i32_0 = arith.constant 0 : i32
    %c0_i32_1 = arith.constant 0 : i32
    return %c0_i32, %c0_i32_0 : i32, i32
  }
  func.func @transform_6(%arg0: i32) -> (i32, i32) {
    %c0_i32 = arith.constant 0 : i32
    %c0_i32_0 = arith.constant 0 : i32
    %c0_i32_1 = arith.constant 0 : i32
    return %c0_i32, %c0_i32_0 : i32, i32
  }
  func.func @transform_7(%arg0: i32) -> (i32, i32) {
    %c0_i32 = arith.constant 0 : i32
    %c0_i32_0 = arith.constant 0 : i32
    return %arg0, %c0_i32 : i32, i32
  }
}

</mosaic_0001>

<llo_original>
// kernel: decoder_forward.1
$region0: #{decoder_forward.1}
  #allocation0 [shape = 'u32[]', space=smem, size = 0x4, offset = 0x4, fixed_abs, tag = 'smem constant byte address 0x4 - core index']
  #allocation1 [shape = 'u32[72,128]{1,0:T(1,128)}', space=vmem, size = 0x9000, scoped, tag = 'internal scratch']
  %s0 = inlined_call_operand.vmem [shape: bf16[16,32], index: 0, kind: input, shape index: {}]
  %s1 = inlined_call_operand.vmem [shape: bf16[32,64], index: 1, kind: input, shape index: {}]
  %s2 = inlined_call_operand.vmem [shape: f32[1,64], index: 2, kind: input, shape index: {}]
  %s3 = inlined_call_operand.vmem [shape: bf16[64,128], index: 3, kind: input, shape index: {}]
  %s4 = inlined_call_operand.vmem [shape: f32[1,128], index: 4, kind: input, shape index: {}]
  %s5 = inlined_call_operand.vmem [shape: bf16[128,784], index: 5, kind: input, shape index: {}]
  %s6 = inlined_call_operand.vmem [shape: f32[1,784], index: 6, kind: input, shape index: {}]
  %s7 = inlined_call_operand.vmem [shape: bf16[16,784], index: 7, kind: output, shape index: {}]
  %s8 = sld [smem:[#allocation0]]
  $region38: #{decoder_forward.1} parent=0
    _
  %s10 = ssub.s32 1, %s8
  %s11 = scalar_select 0, %s10, %s8
  // Predicated region
  $region2: #{decoder_forward.1} parent=0 // pred_check
    _
  $region3: #{decoder_forward.1} parent=0 // pred_check_branch
    %13 = sbr.rel (0) target = $region5
  $region4: #{decoder_forward.1} parent=0 // pred_region
    _
  $region5: #{decoder_forward.1} parent=0 // pred_fallthru
    _
  // Predicated region
  $region6: #{decoder_forward.1} parent=0 // pred_check
    _
  $region7: #{decoder_forward.1} parent=0 // pred_check_branch
    %15 = sbr.rel (0) target = $region9
  $region8: #{decoder_forward.1} parent=0 // pred_region
    _
  $region9: #{decoder_forward.1} parent=0 // pred_fallthru
    _
  // Predicated region
  $region10: #{decoder_forward.1} parent=0 // pred_check
    _
  $region11: #{decoder_forward.1} parent=0 // pred_check_branch
    %17 = sbr.rel (0) target = $region13
  $region12: #{decoder_forward.1} parent=0 // pred_region
    _
  $region13: #{decoder_forward.1} parent=0 // pred_fallthru
    _
  // Predicated region
  $region14: #{decoder_forward.1} parent=0 // pred_check
    _
  $region15: #{decoder_forward.1} parent=0 // pred_check_branch
    %19 = sbr.rel (0) target = $region17
  $region16: #{decoder_forward.1} parent=0 // pred_region
    _
  $region17: #{decoder_forward.1} parent=0 // pred_fallthru
    _
  // Predicated region
  $region18: #{decoder_forward.1} parent=0 // pred_check
    _
  $region19: #{decoder_forward.1} parent=0 // pred_check_branch
    %21 = sbr.rel (0) target = $region21
  $region20: #{decoder_forward.1} parent=0 // pred_region
    _
  $region21: #{decoder_forward.1} parent=0 // pred_fallthru
    _
  // Predicated region
  $region22: #{decoder_forward.1} parent=0 // pred_check
    _
  $region23: #{decoder_forward.1} parent=0 // pred_check_branch
    %23 = sbr.rel (0) target = $region25
  $region24: #{decoder_forward.1} parent=0 // pred_region
    _
  $region25: #{decoder_forward.1} parent=0 // pred_fallthru
    _
  // Predicated region
  $region26: #{decoder_forward.1} parent=0 // pred_check
    _
  $region27: #{decoder_forward.1} parent=0 // pred_check_branch
    %25 = sbr.rel (0) target = $region29
  $region28: #{decoder_forward.1} parent=0 // pred_region
    _
  $region29: #{decoder_forward.1} parent=0 // pred_fallthru
    _
  %v27 = vld [vmem:[%s0] sm:$0xf]
  %v28 = vld [vmem:[%s0 + $0x4] sm:$0xf]
  %v29 = vld [vmem:[%s1] sm:$0xf]
  %v30 = vld [vmem:[%s1 + $0x4] sm:$0xf]
  %v31 = vld [vmem:[%s1 + $0x8] sm:$0xf]
  %v32 = vld [vmem:[%s1 + $0xc] sm:$0xf]
  %v33 = vld [vmem:[%s2] sm:$0x1]
  %v35 = vperm.slane %v33, 0
  %v39 = vunpack.c.l.b16 %v27
  %v40 = vunpack.c.l.b16 %v28
  %v41 = vpack.c.b16 %v40, %v39
  %v46 = vunpack.c.l.b16 %v29
  %v47 = vunpack.c.l.b16 %v30
  %v48 = vunpack.c.l.b16 %v31
  %v49 = vunpack.c.l.b16 %v32
  %v50 = vpack.c.b16 %v47, %v46
  %v51 = vpack.c.b16 %v49, %v48
  %vm54 = vcmask 261120
  %v56 = vsel %vm54, %v41, 0
  %58 = vmatpush.bf16.msra.mxu0 0
  %59 = vmatpush.bf16.msra.mxu0 0
  %60 = vmatpush.bf16.msra.mxu0 0
  %61 = vmatpush.bf16.msra.mxu0 0
  %62 = vmatpush.bf16.msra.mxu0 0
  %63 = vmatpush.bf16.msra.mxu0 0
  %64 = vmatpush.bf16.msra.mxu0 %v51
  %65 = vmatpush.bf16.msra.mxu0 %v50
  %66 = vmatmul.bf16.gmra.mxu0 %v56
  %v67 = vpop.f32.mrf.mxu0
  %v68 = vadd.f32 %v35, %v67
  %v69 = vpop.f32.mrf.mxu0
  %v70 = vadd.f32 %v35, %v69
  %71 = vdwg.mxu0
  %v72 = vmax.f32 %v68, 0.0
  %v73 = vmax.f32 %v70, 0.0
  %v74 = vpack.c.bf16 %v73, %v72
  %v75 = vld [vmem:[%s3] sm:$0xf]
  %v76 = vld [vmem:[%s3 + $0x4] sm:$0xf]
  %v77 = vld [vmem:[%s3 + $0x8] sm:$0xf]
  %v78 = vld [vmem:[%s3 + $0xc] sm:$0xf]
  %v79 = vld [vmem:[%s3 + $0x10] sm:$0xf]
  %v80 = vld [vmem:[%s3 + $0x14] sm:$0xf]
  %v81 = vld [vmem:[%s3 + $0x18] sm:$0xf]
  %v82 = vld [vmem:[%s3 + $0x1c] sm:$0xf]
  %v83 = vld [vmem:[%s4] sm:$0x1]
  %v85 = vperm.slane %v83, 0
  %v95 = vunpack.c.l.b16 %v75
  %v96 = vunpack.c.l.b16 %v76
  %v97 = vunpack.c.l.b16 %v77
  %v98 = vunpack.c.l.b16 %v78
  %v99 = vunpack.c.l.b16 %v79
  %v100 = vunpack.c.l.b16 %v80
  %v101 = vunpack.c.l.b16 %v81
  %v102 = vunpack.c.l.b16 %v82
  %v103 = vpack.c.b16 %v96, %v95
  %v104 = vpack.c.b16 %v98, %v97
  %v105 = vpack.c.b16 %v100, %v99
  %v106 = vpack.c.b16 %v102, %v101
  %vm111 = vcmask 523264
  %v113 = vsel %vm111, %v74, 0
  %115 = vmatpush.bf16.msra.mxu0 0
  %116 = vmatpush.bf16.msra.mxu0 0
  %117 = vmatpush.bf16.msra.mxu0 0
  %118 = vmatpush.bf16.msra.mxu0 0
  %119 = vmatpush.bf16.msra.mxu0 %v106
  %120 = vmatpush.bf16.msra.mxu0 %v105
  %121 = vmatpush.bf16.msra.mxu0 %v104
  %122 = vmatpush.bf16.msra.mxu0 %v103
  %123 = vmatmul.bf16.gmra.mxu0 %v113
  %v124 = vpop.f32.mrf.mxu0
  %v125 = vadd.f32 %v85, %v124
  %v126 = vpop.f32.mrf.mxu0
  %v127 = vadd.f32 %v85, %v126
  %128 = vdwg.mxu0
  %v129 = vmax.f32 %v125, 0.0
  %v130 = vmax.f32 %v127, 0.0
  %v131 = vpack.c.bf16 %v130, %v129
  %v132 = vld [vmem:[%s5] sm:$0xff]
  %v133 = vld [vmem:[%s5 + $0x8] sm:$0xff]
  %v134 = vld [vmem:[%s5 + $0x10] sm:$0xff]
  %v135 = vld [vmem:[%s5 + $0x18] sm:$0xf]
  %v136 = vld [vmem:[%s5 + $0x1c] sm:$0xff]
  %v137 = vld [vmem:[%s5 + $0x24] sm:$0xff]
  %v138 = vld [vmem:[%s5 + $0x2c] sm:$0xff]
  %v139 = vld [vmem:[%s5 + $0x34] sm:$0xf]
  %v140 = vld [vmem:[%s5 + $0x38] sm:$0xff]
  %v141 = vld [vmem:[%s5 + $0x40] sm:$0xff]
  %v142 = vld [vmem:[%s5 + $0x48] sm:$0xff]
  %v143 = vld [vmem:[%s5 + $0x50] sm:$0xf]
  %v144 = vld [vmem:[%s5 + $0x54] sm:$0xff]
  %v145 = vld [vmem:[%s5 + $0x5c] sm:$0xff]
  %v146 = vld [vmem:[%s5 + $0x64] sm:$0xff]
  %v147 = vld [vmem:[%s5 + $0x6c] sm:$0xf]
  %v148 = vld [vmem:[%s5 + $0x70] sm:$0xff]
  %v149 = vld [vmem:[%s5 + $0x78] sm:$0xff]
  %v150 = vld [vmem:[%s5 + $0x80] sm:$0xff]
  %v151 = vld [vmem:[%s5 + $0x88] sm:$0xf]
  %v152 = vld [vmem:[%s5 + $0x8c] sm:$0xff]
  %v153 = vld [vmem:[%s5 + $0x94] sm:$0xff]
  %v154 = vld [vmem:[%s5 + $0x9c] sm:$0xff]
  %v155 = vld [vmem:[%s5 + $0xa4] sm:$0xf]
  %v156 = vld [vmem:[%s5 + $0xa8] sm:$0xff]
  %v157 = vld [vmem:[%s5 + $0xb0] sm:$0xff]
  %v158 = vld [vmem:[%s5 + $0xb8] sm:$0xff]
  %v159 = vld [vmem:[%s5 + $0xc0] sm:$0xf]
  %v160 = vld [vmem:[%s5 + $0xc4] sm:$0xff]
  %v161 = vld [vmem:[%s5 + $0xcc] sm:$0xff]
  %v162 = vld [vmem:[%s5 + $0xd4] sm:$0xff]
  %v163 = vld [vmem:[%s5 + $0xdc] sm:$0xf]
  %v164 = vld [vmem:[%s5 + $0xe0] sm:$0xff]
  %v165 = vld [vmem:[%s5 + $0xe8] sm:$0xff]
  %v166 = vld [vmem:[%s5 + $0xf0] sm:$0xff]
  %v167 = vld [vmem:[%s5 + $0xf8] sm:$0xf]
  %v168 = vld [vmem:[%s5 + $0xfc] sm:$0xff]
  %v169 = vld [vmem:[%s5 + $0x104] sm:$0xff]
  %v170 = vld [vmem:[%s5 + $0x10c] sm:$0xff]
  %v171 = vld [vmem:[%s5 + $0x114] sm:$0xf]
  %v172 = vld [vmem:[%s5 + $0x118] sm:$0xff]
  %v173 = vld [vmem:[%s5 + $0x120] sm:$0xff]
  %v174 = vld [vmem:[%s5 + $0x128] sm:$0xff]
  %v175 = vld [vmem:[%s5 + $0x130] sm:$0xf]
  %v176 = vld [vmem:[%s5 + $0x134] sm:$0xff]
  %v177 = vld [vmem:[%s5 + $0x13c] sm:$0xff]
  %v178 = vld [vmem:[%s5 + $0x144] sm:$0xff]
  %v179 = vld [vmem:[%s5 + $0x14c] sm:$0xf]
  %v180 = vld [vmem:[%s5 + $0x150] sm:$0xff]
  %v181 = vld [vmem:[%s5 + $0x158] sm:$0xff]
  %v182 = vld [vmem:[%s5 + $0x160] sm:$0xff]
  %v183 = vld [vmem:[%s5 + $0x168] sm:$0xf]
  %v184 = vld [vmem:[%s5 + $0x16c] sm:$0xff]
  %v185 = vld [vmem:[%s5 + $0x174] sm:$0xff]
  %v186 = vld [vmem:[%s5 + $0x17c] sm:$0xff]
  %v187 = vld [vmem:[%s5 + $0x184] sm:$0xf]
  %v188 = vld [vmem:[%s5 + $0x188] sm:$0xff]
  %v189 = vld [vmem:[%s5 + $0x190] sm:$0xff]
  %v190 = vld [vmem:[%s5 + $0x198] sm:$0xff]
  %v191 = vld [vmem:[%s5 + $0x1a0] sm:$0xf]
  %v192 = vld [vmem:[%s5 + $0x1a4] sm:$0xff]
  %v193 = vld [vmem:[%s5 + $0x1ac] sm:$0xff]
  %v194 = vld [vmem:[%s5 + $0x1b4] sm:$0xff]
  %v195 = vld [vmem:[%s5 + $0x1bc] sm:$0xf]
  %v196 = vld [vmem:[%s6] sm:$0x7f]
  %v198 = vperm.slane %v196, 0
  %v199 = vperm.slane %v196, 1
  %v200 = vperm.slane %v196, 2
  %v201 = vperm.slane %v196, 3
  %v202 = vperm.slane %v196, 4
  %v203 = vperm.slane %v196, 5
  %v204 = vperm.slane %v196, 6
  %v276 = vunpack.c.l.b16 %v132
  %v277 = vunpack.c.h.b16 %v132
  %v278 = vunpack.c.l.b16 %v133
  %v279 = vunpack.c.h.b16 %v133
  %v280 = vunpack.c.l.b16 %v134
  %v281 = vunpack.c.h.b16 %v134
  %v282 = vunpack.c.l.b16 %v135
  %v283 = vunpack.c.l.b16 %v136
  %v284 = vunpack.c.h.b16 %v136
  %v285 = vunpack.c.l.b16 %v137
  %v286 = vunpack.c.h.b16 %v137
  %v287 = vunpack.c.l.b16 %v138
  %v288 = vunpack.c.h.b16 %v138
  %v289 = vunpack.c.l.b16 %v139
  %v290 = vunpack.c.l.b16 %v140
  %v291 = vunpack.c.h.b16 %v140
  %v292 = vunpack.c.l.b16 %v141
  %v293 = vunpack.c.h.b16 %v141
  %v294 = vunpack.c.l.b16 %v142
  %v295 = vunpack.c.h.b16 %v142
  %v296 = vunpack.c.l.b16 %v143
  %v297 = vunpack.c.l.b16 %v144
  %v298 = vunpack.c.h.b16 %v144
  %v299 = vunpack.c.l.b16 %v145
  %v300 = vunpack.c.h.b16 %v145
  %v301 = vunpack.c.l.b16 %v146
  %v302 = vunpack.c.h.b16 %v146
  %v303 = vunpack.c.l.b16 %v147
  %v304 = vunpack.c.l.b16 %v148
  %v305 = vunpack.c.h.b16 %v148
  %v306 = vunpack.c.l.b16 %v149
  %v307 = vunpack.c.h.b16 %v149
  %v308 = vunpack.c.l.b16 %v150
  %v309 = vunpack.c.h.b16 %v150
  %v310 = vunpack.c.l.b16 %v151
  %v311 = vunpack.c.l.b16 %v152
  %v312 = vunpack.c.h.b16 %v152
  %v313 = vunpack.c.l.b16 %v153
  %v314 = vunpack.c.h.b16 %v153
  %v315 = vunpack.c.l.b16 %v154
  %v316 = vunpack.c.h.b16 %v154
  %v317 = vunpack.c.l.b16 %v155
  %v318 = vunpack.c.l.b16 %v156
  %v319 = vunpack.c.h.b16 %v156
  %v320 = vunpack.c.l.b16 %v157
  %v321 = vunpack.c.h.b16 %v157
  %v322 = vunpack.c.l.b16 %v158
  %v323 = vunpack.c.h.b16 %v158
  %v324 = vunpack.c.l.b16 %v159
  %v325 = vunpack.c.l.b16 %v160
  %v326 = vunpack.c.h.b16 %v160
  %v327 = vunpack.c.l.b16 %v161
  %v328 = vunpack.c.h.b16 %v161
  %v329 = vunpack.c.l.b16 %v162
  %v330 = vunpack.c.h.b16 %v162
  %v331 = vunpack.c.l.b16 %v163
  %v332 = vunpack.c.l.b16 %v164
  %v333 = vunpack.c.h.b16 %v164
  %v334 = vunpack.c.l.b16 %v165
  %v335 = vunpack.c.h.b16 %v165
  %v336 = vunpack.c.l.b16 %v166
  %v337 = vunpack.c.h.b16 %v166
  %v338 = vunpack.c.l.b16 %v167
  %v339 = vunpack.c.l.b16 %v168
  %v340 = vunpack.c.h.b16 %v168
  %v341 = vunpack.c.l.b16 %v169
  %v342 = vunpack.c.h.b16 %v169
  %v343 = vunpack.c.l.b16 %v170
  %v344 = vunpack.c.h.b16 %v170
  %v345 = vunpack.c.l.b16 %v171
  %v346 = vunpack.c.l.b16 %v172
  %v347 = vunpack.c.h.b16 %v172
  %v348 = vunpack.c.l.b16 %v173
  %v349 = vunpack.c.h.b16 %v173
  %v350 = vunpack.c.l.b16 %v174
  %v351 = vunpack.c.h.b16 %v174
  %v352 = vunpack.c.l.b16 %v175
  %v353 = vunpack.c.l.b16 %v176
  %v354 = vunpack.c.h.b16 %v176
  %v355 = vunpack.c.l.b16 %v177
  %v356 = vunpack.c.h.b16 %v177
  %v357 = vunpack.c.l.b16 %v178
  %v358 = vunpack.c.h.b16 %v178
  %v359 = vunpack.c.l.b16 %v179
  %v360 = vunpack.c.l.b16 %v180
  %v361 = vunpack.c.h.b16 %v180
  %v362 = vunpack.c.l.b16 %v181
  %v363 = vunpack.c.h.b16 %v181
  %v364 = vunpack.c.l.b16 %v182
  %v365 = vunpack.c.h.b16 %v182
  %v366 = vunpack.c.l.b16 %v183
  %v367 = vunpack.c.l.b16 %v184
  %v368 = vunpack.c.h.b16 %v184
  %v369 = vunpack.c.l.b16 %v185
  %v370 = vunpack.c.h.b16 %v185
  %v371 = vunpack.c.l.b16 %v186
  %v372 = vunpack.c.h.b16 %v186
  %v373 = vunpack.c.l.b16 %v187
  %v374 = vunpack.c.l.b16 %v188
  %v375 = vunpack.c.h.b16 %v188
  %v376 = vunpack.c.l.b16 %v189
  %v377 = vunpack.c.h.b16 %v189
  %v378 = vunpack.c.l.b16 %v190
  %v379 = vunpack.c.h.b16 %v190
  %v380 = vunpack.c.l.b16 %v191
  %v381 = vunpack.c.l.b16 %v192
  %v382 = vunpack.c.h.b16 %v192
  %v383 = vunpack.c.l.b16 %v193
  %v384 = vunpack.c.h.b16 %v193
  %v385 = vunpack.c.l.b16 %v194
  %v386 = vunpack.c.h.b16 %v194
  %v387 = vunpack.c.l.b16 %v195
  %v388 = vpack.c.b16 %v283, %v276
  %v389 = vpack.c.b16 %v284, %v277
  %v390 = vpack.c.b16 %v285, %v278
  %v391 = vpack.c.b16 %v286, %v279
  %v392 = vpack.c.b16 %v287, %v280
  %v393 = vpack.c.b16 %v288, %v281
  %v394 = vpack.c.b16 %v289, %v282
  %v395 = vpack.c.b16 %v297, %v290
  %v396 = vpack.c.b16 %v298, %v291
  %v397 = vpack.c.b16 %v299, %v292
  %v398 = vpack.c.b16 %v300, %v293
  %v399 = vpack.c.b16 %v301, %v294
  %v400 = vpack.c.b16 %v302, %v295
  %v401 = vpack.c.b16 %v303, %v296
  %v402 = vpack.c.b16 %v311, %v304
  %v403 = vpack.c.b16 %v312, %v305
  %v404 = vpack.c.b16 %v313, %v306
  %v405 = vpack.c.b16 %v314, %v307
  %v406 = vpack.c.b16 %v315, %v308
  %v407 = vpack.c.b16 %v316, %v309
  %v408 = vpack.c.b16 %v317, %v310
  %v409 = vpack.c.b16 %v325, %v318
  %v410 = vpack.c.b16 %v326, %v319
  %v411 = vpack.c.b16 %v327, %v320
  %v412 = vpack.c.b16 %v328, %v321
  %v413 = vpack.c.b16 %v329, %v322
  %v414 = vpack.c.b16 %v330, %v323
  %v415 = vpack.c.b16 %v331, %v324
  %v416 = vpack.c.b16 %v339, %v332
  %v417 = vpack.c.b16 %v340, %v333
  %v418 = vpack.c.b16 %v341, %v334
  %v419 = vpack.c.b16 %v342, %v335
  %v420 = vpack.c.b16 %v343, %v336
  %v421 = vpack.c.b16 %v344, %v337
  %v422 = vpack.c.b16 %v345, %v338
  %v423 = vpack.c.b16 %v353, %v346
  %v424 = vpack.c.b16 %v354, %v347
  %v425 = vpack.c.b16 %v355, %v348
  %v426 = vpack.c.b16 %v356, %v349
  %v427 = vpack.c.b16 %v357, %v350
  %v428 = vpack.c.b16 %v358, %v351
  %v429 = vpack.c.b16 %v359, %v352
  %v430 = vpack.c.b16 %v367, %v360
  %v431 = vpack.c.b16 %v368, %v361
  %v432 = vpack.c.b16 %v369, %v362
  %v433 = vpack.c.b16 %v370, %v363
  %v434 = vpack.c.b16 %v371, %v364
  %v435 = vpack.c.b16 %v372, %v365
  %v436 = vpack.c.b16 %v373, %v366
  %v437 = vpack.c.b16 %v381, %v374
  %v438 = vpack.c.b16 %v382, %v375
  %v439 = vpack.c.b16 %v383, %v376
  %v440 = vpack.c.b16 %v384, %v377
  %v441 = vpack.c.b16 %v385, %v378
  %v442 = vpack.c.b16 %v386, %v379
  %v443 = vpack.c.b16 %v387, %v380
  %500 = vmatpush.bf16.msra.mxu0 %v437
  %501 = vmatpush.bf16.msra.mxu0 %v430
  %502 = vmatpush.bf16.msra.mxu0 %v423
  %503 = vmatpush.bf16.msra.mxu0 %v416
  %504 = vmatpush.bf16.msra.mxu0 %v409
  %505 = vmatpush.bf16.msra.mxu0 %v402
  %506 = vmatpush.bf16.msra.mxu0 %v395
  %507 = vmatpush.bf16.msra.mxu0 %v388
  %508 = vmatmul.bf16.gmra.mxu0 %v131
  %v509 = vpop.f32.mrf.mxu0
  %v510 = vadd.f32 %v198, %v509
  %v511 = vpop.f32.mrf.mxu0
  %v512 = vadd.f32 %v198, %v511
  %513 = vdwg.mxu0
  %514 = vmatpush.bf16.msra.mxu0 %v438
  %515 = vmatpush.bf16.msra.mxu0 %v431
  %516 = vmatpush.bf16.msra.mxu0 %v424
  %517 = vmatpush.bf16.msra.mxu0 %v417
  %518 = vmatpush.bf16.msra.mxu0 %v410
  %519 = vmatpush.bf16.msra.mxu0 %v403
  %520 = vmatpush.bf16.msra.mxu0 %v396
  %521 = vmatpush.bf16.msra.mxu0 %v389
  %522 = vmatmul.bf16.gmra.mxu0 %v131
  %v523 = vpop.f32.mrf.mxu0
  %v524 = vadd.f32 %v199, %v523
  %v525 = vpop.f32.mrf.mxu0
  %v526 = vadd.f32 %v199, %v525
  %527 = vdwg.mxu0
  %528 = vmatpush.bf16.msra.mxu0 %v439
  %529 = vmatpush.bf16.msra.mxu0 %v432
  %530 = vmatpush.bf16.msra.mxu0 %v425
  %531 = vmatpush.bf16.msra.mxu0 %v418
  %532 = vmatpush.bf16.msra.mxu0 %v411
  %533 = vmatpush.bf16.msra.mxu0 %v404
  %534 = vmatpush.bf16.msra.mxu0 %v397
  %535 = vmatpush.bf16.msra.mxu0 %v390
  %536 = vmatmul.bf16.gmra.mxu0 %v131
  %v537 = vpop.f32.mrf.mxu0
  %v538 = vadd.f32 %v200, %v537
  %v539 = vpop.f32.mrf.mxu0
  %v540 = vadd.f32 %v200, %v539
  %541 = vdwg.mxu0
  %542 = vmatpush.bf16.msra.mxu0 %v440
  %543 = vmatpush.bf16.msra.mxu0 %v433
  %544 = vmatpush.bf16.msra.mxu0 %v426
  %545 = vmatpush.bf16.msra.mxu0 %v419
  %546 = vmatpush.bf16.msra.mxu0 %v412
  %547 = vmatpush.bf16.msra.mxu0 %v405
  %548 = vmatpush.bf16.msra.mxu0 %v398
  %549 = vmatpush.bf16.msra.mxu0 %v391
  %550 = vmatmul.bf16.gmra.mxu0 %v131
  %v551 = vpop.f32.mrf.mxu0
  %v552 = vadd.f32 %v201, %v551
  %v553 = vpop.f32.mrf.mxu0
  %v554 = vadd.f32 %v201, %v553
  %555 = vdwg.mxu0
  %556 = vmatpush.bf16.msra.mxu0 %v441
  %557 = vmatpush.bf16.msra.mxu0 %v434
  %558 = vmatpush.bf16.msra.mxu0 %v427
  %559 = vmatpush.bf16.msra.mxu0 %v420
  %560 = vmatpush.bf16.msra.mxu0 %v413
  %561 = vmatpush.bf16.msra.mxu0 %v406
  %562 = vmatpush.bf16.msra.mxu0 %v399
  %563 = vmatpush.bf16.msra.mxu0 %v392
  %564 = vmatmul.bf16.gmra.mxu0 %v131
  %v565 = vpop.f32.mrf.mxu0
  %v566 = vadd.f32 %v202, %v565
  %v567 = vpop.f32.mrf.mxu0
  %v568 = vadd.f32 %v202, %v567
  %569 = vdwg.mxu0
  %570 = vmatpush.bf16.msra.mxu0 %v442
  %571 = vmatpush.bf16.msra.mxu0 %v435
  %572 = vmatpush.bf16.msra.mxu0 %v428
  %573 = vmatpush.bf16.msra.mxu0 %v421
  %574 = vmatpush.bf16.msra.mxu0 %v414
  %575 = vmatpush.bf16.msra.mxu0 %v407
  %576 = vmatpush.bf16.msra.mxu0 %v400
  %577 = vmatpush.bf16.msra.mxu0 %v393
  %578 = vmatmul.bf16.gmra.mxu0 %v131
  %v579 = vpop.f32.mrf.mxu0
  %v580 = vadd.f32 %v203, %v579
  %v581 = vpop.f32.mrf.mxu0
  %v582 = vadd.f32 %v203, %v581
  %583 = vdwg.mxu0
  %584 = vmatpush.bf16.msra.mxu0 %v443
  %585 = vmatpush.bf16.msra.mxu0 %v436
  %586 = vmatpush.bf16.msra.mxu0 %v429
  %587 = vmatpush.bf16.msra.mxu0 %v422
  %588 = vmatpush.bf16.msra.mxu0 %v415
  %589 = vmatpush.bf16.msra.mxu0 %v408
  %590 = vmatpush.bf16.msra.mxu0 %v401
  %591 = vmatpush.bf16.msra.mxu0 %v394
  %592 = vmatmul.bf16.gmra.mxu0 %v131
  %v593 = vpop.f32.mrf.mxu0
  %v594 = vadd.f32 %v204, %v593
  %v595 = vpop.f32.mrf.mxu0
  %v596 = vadd.f32 %v204, %v595
  %597 = vdwg.mxu0
  %v598 = vsub.f32 0.0, %v510
  %v599 = vsub.f32 0.0, %v524
  %v600 = vsub.f32 0.0, %v538
  %v601 = vsub.f32 0.0, %v552
  %v602 = vsub.f32 0.0, %v566
  %v603 = vsub.f32 0.0, %v580
  %v604 = vsub.f32 0.0, %v594
  %v605 = vsub.f32 0.0, %v512
  %v606 = vsub.f32 0.0, %v526
  %v607 = vsub.f32 0.0, %v540
  %v608 = vsub.f32 0.0, %v554
  %v609 = vsub.f32 0.0, %v568
  %v610 = vsub.f32 0.0, %v582
  %v611 = vsub.f32 0.0, %v596
  %v612 = vmul.f32 %v598, 1.442695
  %v613 = vpow.pop %v612
  %v614 = vmul.f32 %v599, 1.442695
  %v615 = vpow.pop %v614
  %v616 = vmul.f32 %v600, 1.442695
  %v617 = vpow.pop %v616
  %v618 = vmul.f32 %v601, 1.442695
  %v619 = vpow.pop %v618
  %v620 = vmul.f32 %v602, 1.442695
  %v621 = vpow.pop %v620
  %v622 = vmul.f32 %v603, 1.442695
  %v623 = vpow.pop %v622
  %v624 = vmul.f32 %v604, 1.442695
  %v625 = vpow.pop %v624
  %v626 = vmul.f32 %v605, 1.442695
  %v627 = vpow.pop %v626
  %v628 = vmul.f32 %v606, 1.442695
  %v629 = vpow.pop %v628
  %v630 = vmul.f32 %v607, 1.442695
  %v631 = vpow.pop %v630
  %v632 = vmul.f32 %v608, 1.442695
  %v633 = vpow.pop %v632
  %v634 = vmul.f32 %v609, 1.442695
  %v635 = vpow.pop %v634
  %v636 = vmul.f32 %v610, 1.442695
  %v637 = vpow.pop %v636
  %v638 = vmul.f32 %v611, 1.442695
  %v639 = vpow.pop %v638
  %v640 = vadd.f32 %v613, 1.0
  %v641 = vadd.f32 %v615, 1.0
  %v642 = vadd.f32 %v617, 1.0
  %v643 = vadd.f32 %v619, 1.0
  %v644 = vadd.f32 %v621, 1.0
  %v645 = vadd.f32 %v623, 1.0
  %v646 = vadd.f32 %v625, 1.0
  %v647 = vadd.f32 %v627, 1.0
  %v648 = vadd.f32 %v629, 1.0
  %v649 = vadd.f32 %v631, 1.0
  %v650 = vadd.f32 %v633, 1.0
  %v651 = vadd.f32 %v635, 1.0
  %v652 = vadd.f32 %v637, 1.0
  %v653 = vadd.f32 %v639, 1.0
  %v654 = vrcp.pop %v640
  %v655 = vrcp.pop %v641
  %v656 = vrcp.pop %v642
  %v657 = vrcp.pop %v643
  %v658 = vrcp.pop %v644
  %v659 = vrcp.pop %v645
  %v660 = vrcp.pop %v646
  %v661 = vrcp.pop %v647
  %v662 = vrcp.pop %v648
  %v663 = vrcp.pop %v649
  %v664 = vrcp.pop %v650
  %v665 = vrcp.pop %v651
  %v666 = vrcp.pop %v652
  %v667 = vrcp.pop %v653
  %v668 = vpack.c.bf16 %v655, %v654
  %v669 = vpack.c.bf16 %v657, %v656
  %v670 = vpack.c.bf16 %v659, %v658
  %v671 = vpack.c.bf16 %v660, %v660
  %v672 = vpack.c.bf16 %v662, %v661
  %v673 = vpack.c.bf16 %v664, %v663
  %v674 = vpack.c.bf16 %v666, %v665
  %v675 = vpack.c.bf16 %v667, %v667
  %676 = vst [vmem:[%s7] sm:$0xff] %v668
  %677 = vst [vmem:[%s7 + $0x8] sm:$0xff] %v669
  %678 = vst [vmem:[%s7 + $0x10] sm:$0xff] %v670
  %vm679 = vcmask 125952
  %680 = vst.msk [vmem:[%s7 + $0x18] sm:$0xf] %vm679, %v671
  %681 = vst [vmem:[%s7 + $0x1c] sm:$0xff] %v672
  %682 = vst [vmem:[%s7 + $0x24] sm:$0xff] %v673
  %683 = vst [vmem:[%s7 + $0x2c] sm:$0xff] %v674
  %684 = vst.msk [vmem:[%s7 + $0x34] sm:$0xf] %vm679, %v675
  // Predicated region
  $region30: #{decoder_forward.1} parent=0 // pred_check
    _
  $region31: #{decoder_forward.1} parent=0 // pred_check_branch
    %686 = sbr.rel (0) target = $region33
  $region32: #{decoder_forward.1} parent=0 // pred_region
    _
  $region33: #{decoder_forward.1} parent=0 // pred_fallthru
    _
  // Predicated region
  $region34: #{decoder_forward.1} parent=0 // pred_check
    _
  $region35: #{decoder_forward.1} parent=0 // pred_check_branch
    %688 = sbr.rel (0) target = $region37
  $region36: #{decoder_forward.1} parent=0 // pred_region
    _
  $region37: #{decoder_forward.1} parent=0 // pred_fallthru
    _

</llo_original>
